<compile_context>
chip_gen: v7x
topology: tpu7x:2x2x1
jax: 0.10.0
libtpu: 0.0.40
codegen_flags: <defaults>
</compile_context>

<pallas_src>
import jax
import jax.numpy as jnp
from jax import lax
from jax.experimental import pallas as pl
from jax.experimental.pallas import tpu as pltpu


def _round_up(x, m):
    return (x + m - 1) // m * m


# ---------------------------------------------------------------------------
# Kernels
# ---------------------------------------------------------------------------
def _gcn_small_kernel(adj_ref, feat_ref, wt_ref, b_ref, out_ref):
    """Whole problem resident in VMEM: fused (adj @ feat) @ W^T + b, all f32."""
    support = jnp.dot(adj_ref[...], feat_ref[...],
                      preferred_element_type=jnp.float32)
    out = jnp.dot(support, wt_ref[...], preferred_element_type=jnp.float32)
    out_ref[...] = out + b_ref[...]


def _fold_kernel(feat_ref, wt_ref, xw_ref):
    """XW = features @ W^T (f32 accumulate), stored in the compute dtype."""
    xw = jnp.dot(feat_ref[...], wt_ref[...], preferred_element_type=jnp.float32)
    xw_ref[...] = xw.astype(xw_ref.dtype)


def _make_tiled_kernel(n, tile_k, xw_resident, compute_dtype):
    """Single-matmul streaming kernel: out[i] = bias + sum_k adj[i,k] @ XW[k]."""
    mask_tail = (n % tile_k) != 0   # static: only mask when a K tile overflows N

    def kernel(adj_ref, xw_ref, b_ref, out_ref):
        k = pl.program_id(1)

        @pl.when(k == 0)
        def _init():
            out_ref[...] = jnp.broadcast_to(b_ref[...], out_ref.shape)

        a = adj_ref[...]                              # f32 tile straight from HBM
        if mask_tail:
            col = k * tile_k + lax.broadcasted_iota(jnp.int32, a.shape, 1)
            a = jnp.where(col < n, a, jnp.zeros_like(a))
        a = a.astype(compute_dtype)                   # in-kernel cast (VPU is idle)

        if xw_resident:
            koff = pl.multiple_of(k * tile_k, tile_k)
            xw = xw_ref[pl.ds(koff, tile_k), :]       # slice of the resident XW
        else:
            xw = xw_ref[...]                          # streamed (tile_k, fout_p)

        out_ref[...] += jnp.dot(a, xw, preferred_element_type=jnp.float32)

    return kernel


# ---------------------------------------------------------------------------
# Weight pre-fold: XW = features @ W^T, zero-padded to (k_pad, fout_p)
# ---------------------------------------------------------------------------
def _fold_features(features, weight, k_pad, fout_p, compute_dtype):
    n, fin = features.shape
    fout = weight.shape[0]
    fin_p = _round_up(fin, 128)
    feat_p = jnp.pad(features.astype(jnp.float32),
                     ((0, k_pad - n), (0, fin_p - fin)))
    wt_p = jnp.pad(weight.T.astype(jnp.float32),
                   ((0, fin_p - fin), (0, fout_p - fout)))

    vmem_bytes = 4 * (feat_p.size + wt_p.size) + 2 * k_pad * fout_p
    if vmem_bytes <= (12 << 20):
        return pl.pallas_call(
            _fold_kernel,
            out_shape=jax.ShapeDtypeStruct((k_pad, fout_p), compute_dtype),
            in_specs=[pl.BlockSpec(memory_space=pltpu.MemorySpace.VMEM)] * 2,
            out_specs=pl.BlockSpec(memory_space=pltpu.MemorySpace.VMEM),
        )(feat_p, wt_p)
    # Very large N*Fin: let XLA do the (still tiny relative to adj) fold.
    return jnp.dot(feat_p, wt_p,
                   preferred_element_type=jnp.float32).astype(compute_dtype)


# ---------------------------------------------------------------------------
# Wrapper
# ---------------------------------------------------------------------------
def gcn_layer1(adj, features, weight, bias, *,
               compute_dtype=jnp.bfloat16, tile_m=512, tile_k=512,
               force_tiled=False):
    """adj: (N, N), features: (N, Fin), weight: (Fout, Fin), bias: (Fout,)."""
    N = adj.shape[0]
    Fin = features.shape[1]
    Fout = weight.shape[0]
    fin_p = _round_up(Fin, 128)
    fout_p = _round_up(Fout, 128)

    # ---- tiny grid-free path (shapes this module implies), f32 throughout ----
    n8 = _round_up(N, 8)
    small_bytes = 4 * (n8 * n8 + n8 * fin_p + fin_p * fout_p
                       + n8 * fout_p + fout_p)
    use_small = (not force_tiled) and (N <= 256) and small_bytes <= (2 << 20)

    if use_small:
        adj_p = jnp.pad(adj.astype(jnp.float32), ((0, n8 - N), (0, n8 - N)))
        feat_p = jnp.pad(features.astype(jnp.float32),
                         ((0, n8 - N), (0, fin_p - Fin)))
        wt_p = jnp.pad(weight.T.astype(jnp.float32),
                       ((0, fin_p - Fin), (0, fout_p - Fout)))
        b_p = jnp.pad(bias.astype(jnp.float32),
                      (0, fout_p - Fout)).reshape(1, fout_p)
        cost = pl.CostEstimate(
            flops=2 * n8 * n8 * fin_p + 2 * n8 * fin_p * fout_p,
            transcendentals=0,
            bytes_accessed=small_bytes)
        out_p = pl.pallas_call(
            _gcn_small_kernel,
            out_shape=jax.ShapeDtypeStruct((n8, fout_p), jnp.float32),
            in_specs=[pl.BlockSpec(memory_space=pltpu.MemorySpace.VMEM)] * 4,
            out_specs=pl.BlockSpec(memory_space=pltpu.MemorySpace.VMEM),
            cost_estimate=cost,
        )(adj_p, feat_p, wt_p, b_p)
        return out_p[:N, :Fout]

    # ---- tiled / streaming path --------------------------------------------
    k_pad = _round_up(N, tile_k)
    xw = _fold_features(features, weight, k_pad, fout_p, compute_dtype)
    b_p = jnp.pad(bias.astype(jnp.float32),
                  (0, fout_p - Fout)).reshape(1, fout_p)

    n_i = pl.cdiv(N, tile_m)
    n_k = k_pad // tile_k
    xw_bytes = xw.size * xw.dtype.itemsize
    xw_resident = xw_bytes <= (4 << 20)   # keep XW fully resident when it fits

    kernel = _make_tiled_kernel(N, tile_k, xw_resident, compute_dtype)
    if xw_resident:
        xw_spec = pl.BlockSpec((k_pad, fout_p), lambda i, k: (0, 0))
    else:
        xw_spec = pl.BlockSpec((tile_k, fout_p), lambda i, k: (k, 0))

    cost = pl.CostEstimate(
        flops=2 * N * N * fout_p + 2 * N * fin_p * fout_p,
        transcendentals=0,
        bytes_accessed=(adj.size * adj.dtype.itemsize
                        + xw_bytes * (1 if xw_resident else n_i)
                        + b_p.size * 4
                        + N * fout_p * 4))

    # TODO(synk): optional int8 adj quantization (v5e/v6e only; v7x has no int MXU).
    out = pl.pallas_call(
        kernel,
        out_shape=jax.ShapeDtypeStruct((N, fout_p), jnp.float32),
        grid_spec=pltpu.PrefetchScalarGridSpec(
            num_scalar_prefetch=0,
            grid=(n_i, n_k),
            in_specs=[
                pl.BlockSpec((tile_m, tile_k), lambda i, k: (i, k)),  # adj (f32)
                xw_spec,                                              # XW (bf16)
                pl.BlockSpec((1, fout_p), lambda i, k: (0, 0)),       # bias (f32)
            ],
            out_specs=pl.BlockSpec((tile_m, fout_p), lambda i, k: (i, 0)),
        ),
        compiler_params=pltpu.CompilerParams(
            dimension_semantics=("parallel", "arbitrary")),
        cost_estimate=cost,
    )(adj, xw, b_p)
    return out[:, :Fout]


# ---------------------------------------------------------------------------
# Demo / self-check
# ---------------------------------------------------------------------------
if __name__ == "__main__":
    key = jax.random.PRNGKey(0)
    k_adj, k_feat, k_w, k_b, k_adj2, k_feat2 = jax.random.split(key, 6)

    # Small shapes implied by the module (graph with N nodes, Linear(Fin, Fout)).
    N, IN_FEATURES, OUT_FEATURES = 8, 16, 32

    adj = jax.random.uniform(k_adj, (N, N), dtype=jnp.float32)
    features = jax.random.normal(k_feat, (N, IN_FEATURES), dtype=jnp.float32)
    bound = 1.0 / (IN_FEATURES ** 0.5)
    weight = jax.random.uniform(k_w, (OUT_FEATURES, IN_FEATURES),
                                dtype=jnp.float32, minval=-bound, maxval=bound)
    bias = jax.random.uniform(k_b, (OUT_FEATURES,), dtype=jnp.float32,
                              minval=-bound, maxval=bound)

    hi = lax.Precision.HIGHEST

    # --- tiny / grid-free path (the module's shapes) ---
    out = gcn_layer1(adj, features, weight, bias)
    jax.block_until_ready(out)
    ref = jnp.dot(jnp.dot(adj, features, precision=hi),
                  weight.T, precision=hi) + bias
    assert out.shape == (N, OUT_FEATURES)
    assert jnp.allclose(out, ref, atol=5e-2, rtol=5e-2), "small-path mismatch"

    # --- tiled / streaming path (ragged N exercises the masked tail K tile) ---
    N2 = 600
    adj2 = jax.random.uniform(k_adj2, (N2, N2), dtype=jnp.float32)
    feat2 = jax.random.normal(k_feat2, (N2, IN_FEATURES), dtype=jnp.float32)
    out2 = gcn_layer1(adj2, feat2, weight, bias, force_tiled=True)
    jax.block_until_ready(out2)
    # Reference mirroring the kernel numerics (bf16 MXU inputs, f32 accumulate).
    xw_m = jnp.dot(feat2, weight.T, precision=hi).astype(jnp.bfloat16)
    ref2 = jnp.dot(adj2.astype(jnp.bfloat16), xw_m,
                   preferred_element_type=jnp.float32) + bias
    assert out2.shape == (N2, OUT_FEATURES)
    assert jnp.allclose(out2, ref2, atol=5e-1, rtol=5e-2), "tiled-path mismatch"

    print("KERNEL_OK")
</pallas_src>

<mosaic_0001>
module attributes {stable_mosaic.version = 11 : i64} {
  func.func @_gcn_small_kernel(%arg0: memref<8x8xf32, #tpu.memory_space<vmem>>, %arg1: memref<8x128xf32, #tpu.memory_space<vmem>>, %arg2: memref<128x128xf32, #tpu.memory_space<vmem>>, %arg3: memref<1x128xf32, #tpu.memory_space<vmem>>, %arg4: memref<8x128xf32, #tpu.memory_space<vmem>>) attributes {dimension_semantics = [], scalar_prefetch = 0 : i64, scratch_operands = 0 : i64, tpu.core_type = #tpu.core_type<tc>} {
    %c0 = arith.constant 0 : index
    %c0_0 = arith.constant 0 : index
    %0 = vector.load %arg0[%c0, %c0_0] : memref<8x8xf32, #tpu.memory_space<vmem>>, vector<8x8xf32>
    %c0_1 = arith.constant 0 : index
    %c0_2 = arith.constant 0 : index
    %1 = vector.load %arg1[%c0_1, %c0_2] : memref<8x128xf32, #tpu.memory_space<vmem>>, vector<8x128xf32>
    %cst = arith.constant dense<0.000000e+00> : vector<8x128xf32>
    %2 = tpu.matmul %0, %1, %cst {dimension_numbers = #tpu.dot_dimension_numbers<[1], [0], [0], [1], [0, 0, 1, 1], [], []>} : vector<8x8xf32>, vector<8x128xf32>, vector<8x128xf32> -> vector<8x128xf32>
    %c0_3 = arith.constant 0 : index
    %c0_4 = arith.constant 0 : index
    %3 = vector.load %arg2[%c0_3, %c0_4] : memref<128x128xf32, #tpu.memory_space<vmem>>, vector<128x128xf32>
    %cst_5 = arith.constant dense<0.000000e+00> : vector<8x128xf32>
    %4 = tpu.matmul %2, %3, %cst_5 {dimension_numbers = #tpu.dot_dimension_numbers<[1], [0], [0], [1], [0, 0, 1, 1], [], []>} : vector<8x128xf32>, vector<128x128xf32>, vector<8x128xf32> -> vector<8x128xf32>
    %c0_6 = arith.constant 0 : index
    %c0_7 = arith.constant 0 : index
    %5 = vector.load %arg3[%c0_6, %c0_7] : memref<1x128xf32, #tpu.memory_space<vmem>>, vector<1x128xf32>
    %6 = vector.broadcast %5 : vector<1x128xf32> to vector<8x128xf32>
    %7 = arith.addf %4, %6 : vector<8x128xf32>
    %c0_8 = arith.constant 0 : index
    %c0_9 = arith.constant 0 : index
    %8 = vector.load %arg4[%c0_8, %c0_9] : memref<8x128xf32, #tpu.memory_space<vmem>>, vector<8x128xf32>
    tpu.vector_store %arg4[%c0_8, %c0_9], %7 {strides = array<i32>} : memref<8x128xf32, #tpu.memory_space<vmem>>, vector<8x128xf32>,
    return
  }
}

</mosaic_0001>

<llo_original>
// kernel: tpu_custom_call.1
$region0: #{tpu_custom_call.1}
  #allocation0 [shape = 'u32[]', space=smem, size = 0x4, offset = 0x4, fixed_abs, tag = 'smem constant byte address 0x4 - core index']
  #allocation1 [shape = 'u32[144,128]{1,0:T(1,128)}', space=vmem, size = 0x12000, scoped, tag = 'internal scratch']
  %s0 = inlined_call_operand.hbm [shape: f32[8,8], index: 0, kind: input, shape index: {}]
  %s1 = inlined_call_operand.hbm [shape: f32[8,128], index: 1, kind: input, shape index: {}]
  %s2 = inlined_call_operand.hbm [shape: f32[128,128], index: 2, kind: input, shape index: {}]
  %s3 = inlined_call_operand.vmem [shape: f32[1,128], index: 3, kind: input, shape index: {}]
  %s4 = inlined_call_operand.hbm [shape: f32[8,128], index: 4, kind: output, shape index: {}]
  %s5 = sld [smem:[#allocation0]]
  $region38: #{tpu_custom_call.1} parent=0
    _
  %s7 = ssub.s32 1, %s5
  %s8 = scalar_select 0, %s7, %s5
  $region1: #{tpu_custom_call.1} parent=0
    #allocation2 [shape = 'u8[4096]{0}', space=vmem, size = 0x1000, scoped, tag = 'input window, operand 0, single buffered']
    #allocation3 [shape = 's32[1]{0}', space=sflag, size = 0x4, scoped, tag = 'scoped memory for tpu_custom_call.1']
    #allocation4 [shape = 's32[1]{0}', space=sflag, size = 0x4, scoped, tag = 'scoped memory for tpu_custom_call.1']
    #allocation5 [shape = 'u8[4096]{0}', space=vmem, size = 0x1000, scoped, tag = 'input window, operand 1, single buffered']
    #allocation6 [shape = 's32[1]{0}', space=sflag, size = 0x4, scoped, tag = 'scoped memory for tpu_custom_call.1']
    #allocation7 [shape = 'u8[65536]{0}', space=vmem, size = 0x10000, scoped, tag = 'input window, operand 2, single buffered']
    #allocation8 [shape = 'u8[4096]{0}', space=vmem, size = 0x1000, scoped, tag = 'output window, operand 0, single buffered']
    %9 = vsyncpa [#allocation3], 0
    %10 = vsyncpa [#allocation6], 0
    %11 = vsyncpa [#allocation4], 0
    // Predicated region
    $region2: #{tpu_custom_call.1} parent=1 // pred_check
      _
    $region3: #{tpu_custom_call.1} parent=1 // pred_check_branch
      %13 = sbr.rel (0) target = $region5
    $region4: #{tpu_custom_call.1} parent=1 // pred_region
      %s15 = ssub.s32 128, 128
      %16 = vsyncadd [#allocation3], %s15
      %s18 = sshll.u32 [#allocation2], 4
      %s19 = int_to_ptr.vmem [resolvable:$true] %s18
      %21 = dma.hbm_to_vmem [thread:$0]  %s0, 128, %s19, [#allocation3]
    $region5: #{tpu_custom_call.1} parent=1 // pred_fallthru
      _
    // Predicated region
    $region6: #{tpu_custom_call.1} parent=1 // pred_check
      _
    $region7: #{tpu_custom_call.1} parent=1 // pred_check_branch
      %23 = sbr.rel (0) target = $region9
    $region8: #{tpu_custom_call.1} parent=1 // pred_region
      %s25 = ssub.s32 128, 128
      %26 = vsyncadd [#allocation6], %s25
      %s28 = sshll.u32 [#allocation5], 4
      %s29 = int_to_ptr.vmem [resolvable:$true] %s28
      %31 = dma.hbm_to_vmem [thread:$0]  %s1, 128, %s29, [#allocation6]
    $region9: #{tpu_custom_call.1} parent=1 // pred_fallthru
      _
    // Predicated region
    $region10: #{tpu_custom_call.1} parent=1 // pred_check
      _
    $region11: #{tpu_custom_call.1} parent=1 // pred_check_branch
      %33 = sbr.rel (0) target = $region13
    $region12: #{tpu_custom_call.1} parent=1 // pred_region
      %s35 = ssub.s32 2048, 2048
      %36 = vsyncadd [#allocation6], %s35
      %s37 = sshll.u32 [#allocation7], 4
      %s38 = int_to_ptr.vmem [resolvable:$true] %s37
      %43 = dma.hbm_to_vmem [thread:$0]  %s2, 2048, %s38, [#allocation6], 128, 128, 8
    $region13: #{tpu_custom_call.1} parent=1 // pred_fallthru
      _
    // Predicated region
    $region14: #{tpu_custom_call.1} parent=1 // pred_check
      _
    $region15: #{tpu_custom_call.1} parent=1 // pred_check_branch
      %45 = sbr.rel (0) target = $region17
    $region16: #{tpu_custom_call.1} parent=1 // pred_region
      _
    $region17: #{tpu_custom_call.1} parent=1 // pred_fallthru
      _
    // Predicated region
    $region18: #{tpu_custom_call.1} parent=1 // pred_check
      _
    $region19: #{tpu_custom_call.1} parent=1 // pred_check_branch
      %47 = sbr.rel (0) target = $region21
    $region20: #{tpu_custom_call.1} parent=1 // pred_region
      %48 = dma.done [#allocation3], 128
    $region21: #{tpu_custom_call.1} parent=1 // pred_fallthru
      _
    // Predicated region
    $region22: #{tpu_custom_call.1} parent=1 // pred_check
      _
    $region23: #{tpu_custom_call.1} parent=1 // pred_check_branch
      %50 = sbr.rel (0) target = $region25
    $region24: #{tpu_custom_call.1} parent=1 // pred_region
      %51 = dma.done [#allocation6], 128
    $region25: #{tpu_custom_call.1} parent=1 // pred_fallthru
      _
    // Predicated region
    $region26: #{tpu_custom_call.1} parent=1 // pred_check
      _
    $region27: #{tpu_custom_call.1} parent=1 // pred_check_branch
      %53 = sbr.rel (0) target = $region29
    $region28: #{tpu_custom_call.1} parent=1 // pred_region
      %54 = dma.done [#allocation6], 2048
    $region29: #{tpu_custom_call.1} parent=1 // pred_fallthru
      _
    %v55 = vld [vmem:[#allocation2] sm:$0xff]
    %v56 = vld [vmem:[#allocation5] sm:$0xff]
    %vm57 = vcmask 64512
    %v59 = vsel %vm57, %v55, 0
    %61 = vmatprep.subr.mxu0 0.0
    %62 = vmatpush1.msra.mxu0 %v56
    %63 = vmatprep.subr.mxu0 0.0
    %64 = vmatpush1.msra.mxu0 0.0
    %65 = vmatprep.subr.mxu0 0.0
    %66 = vmatpush1.msra.mxu0 0.0
    %67 = vmatprep.subr.mxu0 0.0
    %68 = vmatpush1.msra.mxu0 0.0
    %69 = vmatprep.subr.mxu0 0.0
    %70 = vmatpush1.msra.mxu0 0.0
    %71 = vmatprep.subr.mxu0 0.0
    %72 = vmatpush1.msra.mxu0 0.0
    %73 = vmatprep.subr.mxu0 0.0
    %74 = vmatpush1.msra.mxu0 0.0
    %75 = vmatprep.subr.mxu0 0.0
    %76 = vmatpush1.msra.mxu0 0.0
    %77 = vmatprep.subr.mxu0 0.0
    %78 = vmatpush1.msra.mxu0 0.0
    %79 = vmatprep.subr.mxu0 0.0
    %80 = vmatpush1.msra.mxu0 0.0
    %81 = vmatprep.subr.mxu0 0.0
    %82 = vmatpush1.msra.mxu0 0.0
    %83 = vmatprep.subr.mxu0 0.0
    %84 = vmatpush1.msra.mxu0 0.0
    %85 = vmatprep.subr.mxu0 0.0
    %86 = vmatpush1.msra.mxu0 0.0
    %87 = vmatprep.subr.mxu0 0.0
    %88 = vmatpush1.msra.mxu0 0.0
    %89 = vmatprep.subr.mxu0 0.0
    %90 = vmatpush1.msra.mxu0 0.0
    %91 = vmatprep.subr.mxu0 0.0
    %92 = vmatpush1.msra.mxu0 0.0
    %93 = vmatprep.subr.mxu0 0.0
    %94 = vmatpush1.msra.mxu0 0.0
    %95 = vmatprep.subr.mxu0 0.0
    %96 = vmatpush1.msra.mxu0 0.0
    %97 = vmatprep.subr.mxu0 0.0
    %98 = vmatpush1.msra.mxu0 0.0
    %99 = vmatprep.subr.mxu0 0.0
    %100 = vmatpush1.msra.mxu0 0.0
    %101 = vmatprep.subr.mxu0 0.0
    %102 = vmatpush1.msra.mxu0 0.0
    %103 = vmatprep.subr.mxu0 0.0
    %104 = vmatpush1.msra.mxu0 0.0
    %105 = vmatprep.subr.mxu0 0.0
    %106 = vmatpush1.msra.mxu0 0.0
    %107 = vmatprep.subr.mxu0 0.0
    %108 = vmatpush1.msra.mxu0 0.0
    %109 = vmatprep.subr.mxu0 0.0
    %110 = vmatpush1.msra.mxu0 0.0
    %111 = vmatprep.subr.mxu0 0.0
    %112 = vmatpush1.msra.mxu0 0.0
    %113 = vmatprep.subr.mxu0 0.0
    %114 = vmatpush1.msra.mxu0 0.0
    %115 = vmatprep.subr.mxu0 0.0
    %116 = vmatpush1.msra.mxu0 0.0
    %117 = vmatprep.subr.mxu0 0.0
    %118 = vmatpush1.msra.mxu0 0.0
    %119 = vmatprep.subr.mxu0 0.0
    %120 = vmatpush1.msra.mxu0 0.0
    %121 = vmatprep.subr.mxu0 0.0
    %122 = vmatpush1.msra.mxu0 0.0
    %123 = vmatprep.subr.mxu0 0.0
    %124 = vmatpush1.msra.mxu0 0.0
    %125 = vmatprep.mubr.f32.mxu0 0.0
    %126 = vmatmul.mubr.f32.gmra.mrb[0].mxu0 %v59
    %v127 = vpop.f32.mrb[0].mxu0
    %v128 = vadd.f32 0.0, %v127
    %v129 = vpop.f32.mrb[0].mxu0
    %130 = vdwg.mxu0
    %v131 = vld [vmem:[#allocation7] sm:$0xff]
    %v132 = vld [vmem:[#allocation7 + $0x8] sm:$0xff]
    %v133 = vld [vmem:[#allocation7 + $0x10] sm:$0xff]
    %v134 = vld [vmem:[#allocation7 + $0x18] sm:$0xff]
    %v135 = vld [vmem:[#allocation7 + $0x20] sm:$0xff]
    %v136 = vld [vmem:[#allocation7 + $0x28] sm:$0xff]
    %v137 = vld [vmem:[#allocation7 + $0x30] sm:$0xff]
    %v138 = vld [vmem:[#allocation7 + $0x38] sm:$0xff]
    %v139 = vld [vmem:[#allocation7 + $0x40] sm:$0xff]
    %v140 = vld [vmem:[#allocation7 + $0x48] sm:$0xff]
    %v141 = vld [vmem:[#allocation7 + $0x50] sm:$0xff]
    %v142 = vld [vmem:[#allocation7 + $0x58] sm:$0xff]
    %v143 = vld [vmem:[#allocation7 + $0x60] sm:$0xff]
    %v144 = vld [vmem:[#allocation7 + $0x68] sm:$0xff]
    %v145 = vld [vmem:[#allocation7 + $0x70] sm:$0xff]
    %v146 = vld [vmem:[#allocation7 + $0x78] sm:$0xff]
    %v147 = vld [vmem:[%s3] sm:$0x1]
    %v149 = vlaneseq
    %v150 = vshrl.u32 %v149, 7
    %v151 = vsub.s32 0, %v150
    %v152 = vrot.slane %v147, %v151
    %154 = vmatprep.subr.mxu0 0.0
    %155 = vmatpush1.msra.mxu0 %v131
    %156 = vmatprep.subr.mxu0 0.0
    %157 = vmatpush1.msra.mxu0 %v132
    %158 = vmatprep.subr.mxu0 0.0
    %159 = vmatpush1.msra.mxu0 %v133
    %160 = vmatprep.subr.mxu0 0.0
    %161 = vmatpush1.msra.mxu0 %v134
    %162 = vmatprep.subr.mxu0 0.0
    %163 = vmatpush1.msra.mxu0 %v135
    %164 = vmatprep.subr.mxu0 0.0
    %165 = vmatpush1.msra.mxu0 %v136
    %166 = vmatprep.subr.mxu0 0.0
    %167 = vmatpush1.msra.mxu0 %v137
    %168 = vmatprep.subr.mxu0 0.0
    %169 = vmatpush1.msra.mxu0 %v138
    %170 = vmatprep.subr.mxu0 0.0
    %171 = vmatpush1.msra.mxu0 %v139
    %172 = vmatprep.subr.mxu0 0.0
    %173 = vmatpush1.msra.mxu0 %v140
    %174 = vmatprep.subr.mxu0 0.0
    %175 = vmatpush1.msra.mxu0 %v141
    %176 = vmatprep.subr.mxu0 0.0
    %177 = vmatpush1.msra.mxu0 %v142
    %178 = vmatprep.subr.mxu0 0.0
    %179 = vmatpush1.msra.mxu0 %v143
    %180 = vmatprep.subr.mxu0 0.0
    %181 = vmatpush1.msra.mxu0 %v144
    %182 = vmatprep.subr.mxu0 0.0
    %183 = vmatpush1.msra.mxu0 %v145
    %184 = vmatprep.subr.mxu0 0.0
    %185 = vmatpush1.msra.mxu0 %v146
    %186 = vmatprep.subr.mxu0 0.0
    %187 = vmatpush1.msra.mxu0 0.0
    %188 = vmatprep.subr.mxu0 0.0
    %189 = vmatpush1.msra.mxu0 0.0
    %190 = vmatprep.subr.mxu0 0.0
    %191 = vmatpush1.msra.mxu0 0.0
    %192 = vmatprep.subr.mxu0 0.0
    %193 = vmatpush1.msra.mxu0 0.0
    %194 = vmatprep.subr.mxu0 0.0
    %195 = vmatpush1.msra.mxu0 0.0
    %196 = vmatprep.subr.mxu0 0.0
    %197 = vmatpush1.msra.mxu0 0.0
    %198 = vmatprep.subr.mxu0 0.0
    %199 = vmatpush1.msra.mxu0 0.0
    %200 = vmatprep.subr.mxu0 0.0
    %201 = vmatpush1.msra.mxu0 0.0
    %202 = vmatprep.subr.mxu0 0.0
    %203 = vmatpush1.msra.mxu0 0.0
    %204 = vmatprep.subr.mxu0 0.0
    %205 = vmatpush1.msra.mxu0 0.0
    %206 = vmatprep.subr.mxu0 0.0
    %207 = vmatpush1.msra.mxu0 0.0
    %208 = vmatprep.subr.mxu0 0.0
    %209 = vmatpush1.msra.mxu0 0.0
    %210 = vmatprep.subr.mxu0 0.0
    %211 = vmatpush1.msra.mxu0 0.0
    %212 = vmatprep.subr.mxu0 0.0
    %213 = vmatpush1.msra.mxu0 0.0
    %214 = vmatprep.subr.mxu0 0.0
    %215 = vmatpush1.msra.mxu0 0.0
    %216 = vmatprep.subr.mxu0 0.0
    %217 = vmatpush1.msra.mxu0 0.0
    %218 = vmatprep.mubr.f32.mxu0 0.0
    %219 = vmatmul.mubr.f32.gmra.mrb[0].mxu0 %v128
    %v220 = vpop.f32.mrb[0].mxu0
    %v221 = vadd.f32 %v152, %v220
    %v222 = vpop.f32.mrb[0].mxu0
    %223 = vdwg.mxu0
    %224 = vst [vmem:[#allocation8] sm:$0xff] %v221
    // Predicated region
    $region30: #{tpu_custom_call.1} parent=1 // pred_check
      _
    $region31: #{tpu_custom_call.1} parent=1 // pred_check_branch
      %226 = sbr.rel (0) target = $region33
    $region32: #{tpu_custom_call.1} parent=1 // pred_region
      %s228 = ssub.s32 128, 128
      %229 = vsyncadd [#allocation4], %s228
      %s231 = sshll.u32 [#allocation8], 4
      %s232 = int_to_ptr.vmem [resolvable:$true] %s231
      %234 = dma.vmem_to_hbm [thread:$0]  %s232, 128, %s4, [#allocation4]
    $region33: #{tpu_custom_call.1} parent=1 // pred_fallthru
      _
    // Predicated region
    $region34: #{tpu_custom_call.1} parent=1 // pred_check
      _
    $region35: #{tpu_custom_call.1} parent=1 // pred_check_branch
      %236 = sbr.rel (0) target = $region37
    $region36: #{tpu_custom_call.1} parent=1 // pred_region
      %237 = dma.done [#allocation4], 128
    $region37: #{tpu_custom_call.1} parent=1 // pred_fallthru
      _
    %238 = vsyncpa [#allocation3], 1
    %239 = vsyncpa [#allocation6], 1
    %240 = vsyncpa [#allocation4], 1

</llo_original>
